<compile_context>
chip_gen: v5e
topology: v5e:2x2
jax: 0.10.0
libtpu: 0.0.40
codegen_flags: <defaults>
</compile_context>

<pallas_src>
import math
import functools

import jax
import jax.numpy as jnp
from jax.experimental import pallas as pl
from jax.experimental.pallas import tpu as pltpu


# ----------------------------- kernel ---------------------------------------


def _bert_att_output_kernel(h_ref, x_ref, w_ref, p_ref, o_ref, *, eps, act):
    # h_ref : (TM, H) tile of attention output (native dtype -> MXU)
    # x_ref : (TM, H) tile of residual input
    # w_ref : (H, H)  dense weight, [in, out] layout (native dtype -> MXU)
    # p_ref : (3, H)  f32 packed params: row 0 = dense bias, 1 = LN gamma, 2 = LN beta

    # dense: operands stay in native dtype, accumulate in f32 on the MXU.
    y = jnp.dot(h_ref[...], w_ref[...], preferred_element_type=jnp.float32)

    params = p_ref[...]                       # (3, H) f32
    y = y + params[0:1, :]                    # dense bias

    # dropout: identity in eval mode.
    # TODO(synk): training-mode dropout (random masking) not implemented here.

    # residual add (f32) + LayerNorm over hidden axis.
    y = y + x_ref[...].astype(jnp.float32)
    mean = jnp.mean(y, axis=-1, keepdims=True)
    yc = y - mean
    # centered two-pass variance (cancellation-safe), clamped for rsqrt.
    var = jnp.maximum(jnp.mean(yc * yc, axis=-1, keepdims=True), 0.0)
    yn = yc * jax.lax.rsqrt(var + eps)
    yn = yn * params[1:2, :] + params[2:3, :]

    # activation (default: erf GELU — matches the PyTorch reference exactly)
    if act == "gelu":
        out = yn * 0.5 * (1.0 + jax.lax.erf(yn * (1.0 / math.sqrt(2.0))))
    elif act == "relu":
        out = jnp.maximum(yn, 0.0)
    elif act == "swish":
        out = yn * jax.nn.sigmoid(yn)
    else:
        raise ValueError(f"unsupported activation: {act}")

    o_ref[...] = out.astype(o_ref.dtype)


# ------------------------- host-side helpers --------------------------------


def prepare_bert_att_output_params(dense_w, dense_b, ln_gamma, ln_beta,
                                   *, weight_dtype=None):
    """One-time layout prep (hoisted off the per-call critical path).

    dense_w is PyTorch layout [H_out, H_in]; returned transposed to [H_in, H_out]
    (optionally cast to bf16 for the MXU). bias / gamma / beta are packed into a
    single (3, H) f32 operand so the kernel needs one param DMA instead of three.
    """
    w_t = jnp.asarray(dense_w).T
    if weight_dtype is not None:
        w_t = w_t.astype(weight_dtype)
    H = w_t.shape[1]
    packed = jnp.stack(
        [jnp.asarray(dense_b, jnp.float32).reshape(H),
         jnp.asarray(ln_gamma, jnp.float32).reshape(H),
         jnp.asarray(ln_beta, jnp.float32).reshape(H)], axis=0)
    return w_t, packed


def _tpu_vmem_and_cores():
    """(physical VMEM bytes, TensorCore count) with conservative fallbacks."""
    cap = 64 * 1024 * 1024          # conservative: v7x per-core VMEM
    cores = 1
    try:
        info = pltpu.get_tpu_info()
        cap = int(getattr(info, "vmem_capacity_bytes", cap)) or cap
        for name in ("num_cores", "core_count", "num_tensorcores",
                     "tensorcore_count"):
            v = getattr(info, name, None)
            if v:
                cores = int(v)
                break
    except Exception:
        pass
    return cap, cores


def _align_down(tm):
    # prefer native MXU-friendly tiles: multiples of 256, then 128, then 8.
    for a in (256, 128, 8):
        if tm >= a:
            return tm - (tm % a)
    return max(tm, 1)


def _pick_tile_m(M, requested, *, min_steps):
    """Largest aligned row tile <= requested giving >= min_steps grid steps."""
    tm = min(requested, M)
    if tm < 8:
        return M                    # tiny input: one full block (legal: block == dim)
    tm = _align_down(tm)
    while pl.cdiv(M, tm) < min_steps and tm > 8:
        nxt = _align_down(max(tm // 2, 8))
        if nxt >= tm:
            break
        tm = nxt
    return tm


def _footprint_bytes(tm, H, h_dt, x_dt, out_dt, w_dt):
    f32 = 4
    hb, xb, ob, wb = (jnp.dtype(d).itemsize for d in (h_dt, x_dt, out_dt, w_dt))
    streamed = 2 * tm * H * (hb + xb + ob)          # double-buffered h / x / out tiles
    invariant = H * H * wb + 8 * H * f32            # weight + (3,H) params (sublane-padded)
    # count invariant x2 so the budget also covers the double-buffered fallback path
    epilogue = 3 * tm * H * f32                     # f32 y / centered / normalized temps
    return streamed + 2 * invariant + epilogue


def _vmem_limit_bytes(footprint, cap):
    headroom = 2 * 1024 * 1024
    limit = max(int(footprint * 1.5), 16 * 1024 * 1024)
    return int(min(limit, cap - headroom))


# ------------------------------ wrapper --------------------------------------


def bert_att_output(hidden_states, input_tensor, dense_w_t, fused_params,
                    *, eps=1e-12, act="gelu", tile_m=None):
    """hidden_states, input_tensor: [B, S, H].
    dense_w_t: [H_in, H_out], fused_params: (3, H) f32 — both from
    prepare_bert_att_output_params()."""
    B, S, H = hidden_states.shape
    M = B * S
    h2 = hidden_states.reshape(M, H)
    x2 = input_tensor.reshape(M, H)
    out_dtype = hidden_states.dtype

    cap, cores = _tpu_vmem_and_cores()

    # generation-aware default: bigger tiles on 128-MiB-VMEM chips (v5e/v6e),
    # 256 on v7x (half the VMEM, two cores).
    requested = tile_m
    if requested is None:
        requested = 512 if (cap >= 96 * 1024 * 1024 and M >= 4 * 512) else 256

    # >= 2 pipelined steps per TensorCore so DMA overlaps compute on every core.
    min_steps = max(2, 2 * cores)
    tm = _pick_tile_m(M, requested, min_steps=min_steps)

    # shrink further if the honest footprint would crowd physical VMEM.
    while tm > 8 and _footprint_bytes(tm, H, h2.dtype, x2.dtype, out_dtype,
                                      dense_w_t.dtype) > int(cap * 0.75):
        nxt = _align_down(max(tm // 2, 8))
        if nxt >= tm:
            break
        tm = nxt

    grid = (pl.cdiv(M, tm),)        # last block may be partial; writes are clipped
    kernel = functools.partial(_bert_att_output_kernel, eps=eps, act=act)

    footprint = _footprint_bytes(tm, H, h2.dtype, x2.dtype, out_dtype,
                                 dense_w_t.dtype)
    vmem_limit = _vmem_limit_bytes(footprint, cap)

    io_bytes = M * H * (jnp.dtype(h2.dtype).itemsize
                        + jnp.dtype(x2.dtype).itemsize
                        + jnp.dtype(out_dtype).itemsize)
    cost = pl.CostEstimate(
        flops=2 * M * H * H,
        transcendentals=M * H,
        bytes_accessed=io_bytes + H * H * jnp.dtype(dense_w_t.dtype).itemsize
        + 3 * H * 4)

    def _call(single_buffer):
        # grid-invariant operands don't need a second buffer; Buffered(1) reclaims it.
        inv_kwargs = {"pipeline_mode": pl.Buffered(1)} if single_buffer else {}
        in_specs = [
            pl.BlockSpec((tm, H), lambda i: (i, 0)),               # hidden tile
            pl.BlockSpec((tm, H), lambda i: (i, 0)),               # residual tile
            pl.BlockSpec((H, H), lambda i: (0, 0), **inv_kwargs),  # weight (resident)
            pl.BlockSpec((3, H), lambda i: (0, 0), **inv_kwargs),  # bias/gamma/beta
        ]
        return pl.pallas_call(
            kernel,
            out_shape=jax.ShapeDtypeStruct((M, H), out_dtype),
            grid_spec=pltpu.PrefetchScalarGridSpec(
                num_scalar_prefetch=0,
                grid=grid,
                in_specs=in_specs,
                out_specs=pl.BlockSpec((tm, H), lambda i: (i, 0)),
            ),
            compiler_params=pltpu.CompilerParams(
                dimension_semantics=("parallel",),
                vmem_limit_bytes=vmem_limit),
            cost_estimate=cost,
        )(h2, x2, dense_w_t, fused_params)

    try:
        out = _call(True)
    except Exception:
        # fallback for jax versions where Buffered(1) on a pallas_call BlockSpec
        # is not supported — correctness identical, just double-buffers the weight.
        out = _call(False)

    return out.reshape(B, S, H)


# ------------------------------ reference ------------------------------------


def _reference(hidden_states, input_tensor, dense_w, dense_b, ln_gamma, ln_beta,
               eps=1e-12):
    y = hidden_states @ dense_w.T + dense_b
    y = y + input_tensor
    mean = jnp.mean(y, axis=-1, keepdims=True)
    var = jnp.mean(jnp.square(y - mean), axis=-1, keepdims=True)
    yn = (y - mean) / jnp.sqrt(var + eps) * ln_gamma + ln_beta
    return yn * 0.5 * (1.0 + jax.lax.erf(yn / jnp.sqrt(2.0)))


# -------------------------------- tests --------------------------------------


if __name__ == "__main__":
    key = jax.random.PRNGKey(0)

    # ---- test 1: tiny f32 (exactness) ----
    B, S, H = 2, 8, 32
    k1, k2, k3, k4 = jax.random.split(key, 4)
    hidden_states = jax.random.normal(k1, (B, S, H), dtype=jnp.float32)
    input_tensor = jax.random.normal(k2, (B, S, H), dtype=jnp.float32)
    dense_w = jax.random.normal(k3, (H, H), dtype=jnp.float32) * (1.0 / math.sqrt(H))
    dense_b = jax.random.normal(k4, (H,), dtype=jnp.float32) * 0.02
    ln_gamma = jnp.ones((H,), dtype=jnp.float32)
    ln_beta = jnp.zeros((H,), dtype=jnp.float32)

    w_t, packed = prepare_bert_att_output_params(dense_w, dense_b, ln_gamma, ln_beta)
    out = jax.block_until_ready(
        bert_att_output(hidden_states, input_tensor, w_t, packed))
    ref = _reference(hidden_states, input_tensor, dense_w, dense_b, ln_gamma, ln_beta)
    assert out.shape == (B, S, H)
    assert jnp.allclose(out, ref, atol=1e-4, rtol=1e-4), "f32 mismatch vs reference"

    # ---- test 2: bf16 I/O, lane-dense H=128 (production-shaped path) ----
    B2, S2, H2 = 2, 64, 128
    k5, k6, k7, k8 = jax.random.split(jax.random.PRNGKey(1), 4)
    h_bf = jax.random.normal(k5, (B2, S2, H2), dtype=jnp.float32).astype(jnp.bfloat16)
    x_bf = jax.random.normal(k6, (B2, S2, H2), dtype=jnp.float32).astype(jnp.bfloat16)
    w2 = (jax.random.normal(k7, (H2, H2), dtype=jnp.float32)
          * (1.0 / math.sqrt(H2))).astype(jnp.bfloat16)
    b2 = (jax.random.normal(k8, (H2,), dtype=jnp.float32) * 0.02)
    g2 = jnp.ones((H2,), dtype=jnp.float32)
    be2 = jnp.zeros((H2,), dtype=jnp.float32)

    w2_t, packed2 = prepare_bert_att_output_params(
        w2, b2, g2, be2, weight_dtype=jnp.bfloat16)
    out2 = jax.block_until_ready(bert_att_output(h_bf, x_bf, w2_t, packed2))
    ref2 = _reference(h_bf.astype(jnp.float32), x_bf.astype(jnp.float32),
                      w2.astype(jnp.float32), b2, g2, be2)
    assert out2.shape == (B2, S2, H2)
    assert jnp.allclose(out2.astype(jnp.float32), ref2, atol=0.1, rtol=0.1), \
        "bf16 mismatch vs reference"

    print("KERNEL_OK")
</pallas_src>

<mosaic_0001>
module attributes {stable_mosaic.version = 11 : i64} {
  func.func @_bert_att_output_kernel(%arg0: i32, %arg1: memref<8x32xf32, #tpu.memory_space<vmem>>, %arg2: memref<8x32xf32, #tpu.memory_space<vmem>>, %arg3: memref<32x32xf32, #tpu.memory_space<vmem>>, %arg4: memref<3x32xf32, #tpu.memory_space<vmem>>, %arg5: memref<8x32xf32, #tpu.memory_space<vmem>>) attributes {dimension_semantics = [#tpu.dimension_semantics<parallel>], iteration_bounds = array<i64: 2>, scalar_prefetch = 0 : i64, scratch_operands = 0 : i64, tpu.core_type = #tpu.core_type<tc>, window_params = [{transform_indices = @transform_0, window_bounds = array<i64: 8, 32>}, {transform_indices = @transform_1, window_bounds = array<i64: 8, 32>}, {pipeline_mode = #tpu.pipeline_mode<synchronous>, transform_indices = @transform_2, window_bounds = array<i64: 32, 32>}, {pipeline_mode = #tpu.pipeline_mode<synchronous>, transform_indices = @transform_3, window_bounds = array<i64: 3, 32>}, {transform_indices = @transform_4, window_bounds = array<i64: 8, 32>}]} {
    %c0 = arith.constant 0 : index
    %c0_0 = arith.constant 0 : index
    %0 = vector.load %arg1[%c0, %c0_0] : memref<8x32xf32, #tpu.memory_space<vmem>>, vector<8x32xf32>
    %c0_1 = arith.constant 0 : index
    %c0_2 = arith.constant 0 : index
    %1 = vector.load %arg3[%c0_1, %c0_2] : memref<32x32xf32, #tpu.memory_space<vmem>>, vector<32x32xf32>
    %cst = arith.constant dense<0.000000e+00> : vector<8x32xf32>
    %2 = tpu.matmul %0, %1, %cst {dimension_numbers = #tpu.dot_dimension_numbers<[1], [0], [0], [1], [0, 0, 1, 1], [], []>} : vector<8x32xf32>, vector<32x32xf32>, vector<8x32xf32> -> vector<8x32xf32>
    %c0_3 = arith.constant 0 : index
    %c0_4 = arith.constant 0 : index
    %3 = vector.load %arg4[%c0_3, %c0_4] : memref<3x32xf32, #tpu.memory_space<vmem>>, vector<3x32xf32>
    %4 = vector.extract_strided_slice %3 {offsets = [0, 0], sizes = [1, 32], strides = [1, 1]} : vector<3x32xf32> to vector<1x32xf32>
    %5 = vector.broadcast %4 : vector<1x32xf32> to vector<8x32xf32>
    %6 = arith.addf %2, %5 : vector<8x32xf32>
    %c0_5 = arith.constant 0 : index
    %c0_6 = arith.constant 0 : index
    %7 = vector.load %arg2[%c0_5, %c0_6] : memref<8x32xf32, #tpu.memory_space<vmem>>, vector<8x32xf32>
    %8 = arith.addf %6, %7 : vector<8x32xf32>
    %cst_7 = arith.constant dense<0.000000e+00> : vector<8xf32>
    %9 = vector.multi_reduction <add>, %8, %cst_7 [1] : vector<8x32xf32> to vector<8xf32>
    %10 = vector.shape_cast %9 : vector<8xf32> to vector<8x1xf32>
    %cst_8 = arith.constant 3.200000e+01 : f32
    %11 = vector.broadcast %cst_8 : f32 to vector<8x1xf32>
    %12 = arith.divf %10, %11 : vector<8x1xf32>
    %13 = vector.broadcast %12 : vector<8x1xf32> to vector<8x32xf32>
    %14 = arith.subf %8, %13 : vector<8x32xf32>
    %15 = arith.mulf %14, %14 : vector<8x32xf32>
    %cst_9 = arith.constant dense<0.000000e+00> : vector<8xf32>
    %16 = vector.multi_reduction <add>, %15, %cst_9 [1] : vector<8x32xf32> to vector<8xf32>
    %17 = vector.shape_cast %16 : vector<8xf32> to vector<8x1xf32>
    %cst_10 = arith.constant 3.200000e+01 : f32
    %18 = vector.broadcast %cst_10 : f32 to vector<8x1xf32>
    %19 = arith.divf %17, %18 : vector<8x1xf32>
    %cst_11 = arith.constant 0.000000e+00 : f32
    %20 = vector.broadcast %cst_11 : f32 to vector<8x1xf32>
    %21 = arith.maximumf %19, %20 : vector<8x1xf32>
    %cst_12 = arith.constant 9.99999996E-13 : f32
    %22 = vector.broadcast %cst_12 : f32 to vector<8x1xf32>
    %23 = arith.addf %21, %22 : vector<8x1xf32>
    %24 = math.rsqrt %23 : vector<8x1xf32>
    %25 = vector.broadcast %24 : vector<8x1xf32> to vector<8x32xf32>
    %26 = arith.mulf %14, %25 : vector<8x32xf32>
    %27 = vector.extract_strided_slice %3 {offsets = [1, 0], sizes = [1, 32], strides = [1, 1]} : vector<3x32xf32> to vector<1x32xf32>
    %28 = vector.broadcast %27 : vector<1x32xf32> to vector<8x32xf32>
    %29 = arith.mulf %26, %28 : vector<8x32xf32>
    %30 = vector.extract_strided_slice %3 {offsets = [2, 0], sizes = [1, 32], strides = [1, 1]} : vector<3x32xf32> to vector<1x32xf32>
    %31 = vector.broadcast %30 : vector<1x32xf32> to vector<8x32xf32>
    %32 = arith.addf %29, %31 : vector<8x32xf32>
    %cst_13 = arith.constant 5.000000e-01 : f32
    %33 = vector.broadcast %cst_13 : f32 to vector<8x32xf32>
    %34 = arith.mulf %32, %33 : vector<8x32xf32>
    %cst_14 = arith.constant 0.707106769 : f32
    %35 = vector.broadcast %cst_14 : f32 to vector<8x32xf32>
    %36 = arith.mulf %32, %35 : vector<8x32xf32>
    %37 = math.erf %36 : vector<8x32xf32>
    %cst_15 = arith.constant 1.000000e+00 : f32
    %38 = vector.broadcast %cst_15 : f32 to vector<8x32xf32>
    %39 = arith.addf %38, %37 : vector<8x32xf32>
    %40 = arith.mulf %34, %39 : vector<8x32xf32>
    %c0_16 = arith.constant 0 : index
    %c0_17 = arith.constant 0 : index
    %41 = vector.load %arg5[%c0_16, %c0_17] : memref<8x32xf32, #tpu.memory_space<vmem>>, vector<8x32xf32>
    tpu.vector_store %arg5[%c0_16, %c0_17], %40 {strides = array<i32>} : memref<8x32xf32, #tpu.memory_space<vmem>>, vector<8x32xf32>,
    return
  }
  func.func @transform_0(%arg0: i32) -> (i32, i32) {
    %c0_i32 = arith.constant 0 : i32
    %c0_i32_0 = arith.constant 0 : i32
    return %arg0, %c0_i32 : i32, i32
  }
  func.func @transform_1(%arg0: i32) -> (i32, i32) {
    %c0_i32 = arith.constant 0 : i32
    %c0_i32_0 = arith.constant 0 : i32
    return %arg0, %c0_i32 : i32, i32
  }
  func.func @transform_2(%arg0: i32) -> (i32, i32) {
    %c0_i32 = arith.constant 0 : i32
    %c0_i32_0 = arith.constant 0 : i32
    %c0_i32_1 = arith.constant 0 : i32
    return %c0_i32, %c0_i32_0 : i32, i32
  }
  func.func @transform_3(%arg0: i32) -> (i32, i32) {
    %c0_i32 = arith.constant 0 : i32
    %c0_i32_0 = arith.constant 0 : i32
    %c0_i32_1 = arith.constant 0 : i32
    return %c0_i32, %c0_i32_0 : i32, i32
  }
  func.func @transform_4(%arg0: i32) -> (i32, i32) {
    %c0_i32 = arith.constant 0 : i32
    %c0_i32_0 = arith.constant 0 : i32
    return %arg0, %c0_i32 : i32, i32
  }
}

module attributes {stable_mosaic.version = 11 : i64} {
  func.func @_bert_att_output_kernel(%arg0: i32, %arg1: memref<8x32xf32, #tpu.memory_space<vmem>>, %arg2: memref<8x32xf32, #tpu.memory_space<vmem>>, %arg3: memref<32x32xf32, #tpu.memory_space<vmem>>, %arg4: memref<3x32xf32, #tpu.memory_space<vmem>>, %arg5: memref<8x32xf32, #tpu.memory_space<vmem>>) attributes {dimension_semantics = [#tpu.dimension_semantics<parallel>], iteration_bounds = array<i64: 2>, scalar_prefetch = 0 : i64, scratch_operands = 0 : i64, tpu.core_type = #tpu.core_type<tc>, window_params = [{transform_indices = @transform_0, window_bounds = array<i64: 8, 32>}, {transform_indices = @transform_1, window_bounds = array<i64: 8, 32>}, {pipeline_mode = #tpu.pipeline_mode<synchronous>, transform_indices = @transform_2, window_bounds = array<i64: 32, 32>}, {pipeline_mode = #tpu.pipeline_mode<synchronous>, transform_indices = @transform_3, window_bounds = array<i64: 3, 32>}, {transform_indices = @transform_4, window_bounds = array<i64: 8, 32>}]} {
    %c0 = arith.constant 0 : index
    %c0_0 = arith.constant 0 : index
    %0 = vector.load %arg1[%c0, %c0_0] : memref<8x32xf32, #tpu.memory_space<vmem>>, vector<8x32xf32>
    %c0_1 = arith.constant 0 : index
    %c0_2 = arith.constant 0 : index
    %1 = vector.load %arg3[%c0_1, %c0_2] : memref<32x32xf32, #tpu.memory_space<vmem>>, vector<32x32xf32>
    %cst = arith.constant dense<0.000000e+00> : vector<8x32xf32>
    %2 = tpu.matmul %0, %1, %cst {dimension_numbers = #tpu.dot_dimension_numbers<[1], [0], [0], [1], [0, 0, 1, 1], [], []>} : vector<8x32xf32>, vector<32x32xf32>, vector<8x32xf32> -> vector<8x32xf32>
    %c0_3 = arith.constant 0 : index
    %c0_4 = arith.constant 0 : index
    %3 = vector.load %arg4[%c0_3, %c0_4] : memref<3x32xf32, #tpu.memory_space<vmem>>, vector<3x32xf32>
    %4 = vector.extract_strided_slice %3 {offsets = [0, 0], sizes = [1, 32], strides = [1, 1]} : vector<3x32xf32> to vector<1x32xf32>
    %5 = vector.broadcast %4 : vector<1x32xf32> to vector<8x32xf32>
    %6 = arith.addf %2, %5 : vector<8x32xf32>
    %c0_5 = arith.constant 0 : index
    %c0_6 = arith.constant 0 : index
    %7 = vector.load %arg2[%c0_5, %c0_6] : memref<8x32xf32, #tpu.memory_space<vmem>>, vector<8x32xf32>
    %8 = arith.addf %6, %7 : vector<8x32xf32>
    %cst_7 = arith.constant dense<0.000000e+00> : vector<8xf32>
    %9 = vector.multi_reduction <add>, %8, %cst_7 [1] : vector<8x32xf32> to vector<8xf32>
    %10 = vector.shape_cast %9 : vector<8xf32> to vector<8x1xf32>
    %cst_8 = arith.constant 3.200000e+01 : f32
    %11 = vector.broadcast %cst_8 : f32 to vector<8x1xf32>
    %12 = arith.divf %10, %11 : vector<8x1xf32>
    %13 = vector.broadcast %12 : vector<8x1xf32> to vector<8x32xf32>
    %14 = arith.subf %8, %13 : vector<8x32xf32>
    %15 = arith.mulf %14, %14 : vector<8x32xf32>
    %cst_9 = arith.constant dense<0.000000e+00> : vector<8xf32>
    %16 = vector.multi_reduction <add>, %15, %cst_9 [1] : vector<8x32xf32> to vector<8xf32>
    %17 = vector.shape_cast %16 : vector<8xf32> to vector<8x1xf32>
    %cst_10 = arith.constant 3.200000e+01 : f32
    %18 = vector.broadcast %cst_10 : f32 to vector<8x1xf32>
    %19 = arith.divf %17, %18 : vector<8x1xf32>
    %cst_11 = arith.constant 0.000000e+00 : f32
    %20 = vector.broadcast %cst_11 : f32 to vector<8x1xf32>
    %21 = arith.maximumf %19, %20 : vector<8x1xf32>
    %cst_12 = arith.constant 9.99999996E-13 : f32
    %22 = vector.broadcast %cst_12 : f32 to vector<8x1xf32>
    %23 = arith.addf %21, %22 : vector<8x1xf32>
    %24 = math.rsqrt %23 : vector<8x1xf32>
    %25 = vector.broadcast %24 : vector<8x1xf32> to vector<8x32xf32>
    %26 = arith.mulf %14, %25 : vector<8x32xf32>
    %27 = vector.extract_strided_slice %3 {offsets = [1, 0], sizes = [1, 32], strides = [1, 1]} : vector<3x32xf32> to vector<1x32xf32>
    %28 = vector.broadcast %27 : vector<1x32xf32> to vector<8x32xf32>
    %29 = arith.mulf %26, %28 : vector<8x32xf32>
    %30 = vector.extract_strided_slice %3 {offsets = [2, 0], sizes = [1, 32], strides = [1, 1]} : vector<3x32xf32> to vector<1x32xf32>
    %31 = vector.broadcast %30 : vector<1x32xf32> to vector<8x32xf32>
    %32 = arith.addf %29, %31 : vector<8x32xf32>
    %cst_13 = arith.constant 5.000000e-01 : f32
    %33 = vector.broadcast %cst_13 : f32 to vector<8x32xf32>
    %34 = arith.mulf %32, %33 : vector<8x32xf32>
    %cst_14 = arith.constant 0.707106769 : f32
    %35 = vector.broadcast %cst_14 : f32 to vector<8x32xf32>
    %36 = arith.mulf %32, %35 : vector<8x32xf32>
    %37 = math.erf %36 : vector<8x32xf32>
    %cst_15 = arith.constant 1.000000e+00 : f32
    %38 = vector.broadcast %cst_15 : f32 to vector<8x32xf32>
    %39 = arith.addf %38, %37 : vector<8x32xf32>
    %40 = arith.mulf %34, %39 : vector<8x32xf32>
    %c0_16 = arith.constant 0 : index
    %c0_17 = arith.constant 0 : index
    %41 = vector.load %arg5[%c0_16, %c0_17] : memref<8x32xf32, #tpu.memory_space<vmem>>, vector<8x32xf32>
    tpu.vector_store %arg5[%c0_16, %c0_17], %40 {strides = array<i32>} : memref<8x32xf32, #tpu.memory_space<vmem>>, vector<8x32xf32>,
    return
  }
  func.func @transform_0(%arg0: i32) -> (i32, i32) {
    %c0_i32 = arith.constant 0 : i32
    %c0_i32_0 = arith.constant 0 : i32
    return %arg0, %c0_i32 : i32, i32
  }
  func.func @transform_1(%arg0: i32) -> (i32, i32) {
    %c0_i32 = arith.constant 0 : i32
    %c0_i32_0 = arith.constant 0 : i32
    return %arg0, %c0_i32 : i32, i32
  }
  func.func @transform_2(%arg0: i32) -> (i32, i32) {
    %c0_i32 = arith.constant 0 : i32
    %c0_i32_0 = arith.constant 0 : i32
    %c0_i32_1 = arith.constant 0 : i32
    return %c0_i32, %c0_i32_0 : i32, i32
  }
  func.func @transform_3(%arg0: i32) -> (i32, i32) {
    %c0_i32 = arith.constant 0 : i32
    %c0_i32_0 = arith.constant 0 : i32
    %c0_i32_1 = arith.constant 0 : i32
    return %c0_i32, %c0_i32_0 : i32, i32
  }
  func.func @transform_4(%arg0: i32) -> (i32, i32) {
    %c0_i32 = arith.constant 0 : i32
    %c0_i32_0 = arith.constant 0 : i32
    return %arg0, %c0_i32 : i32, i32
  }
}

</mosaic_0001>

<llo_original>
// kernel: tpu_custom_call.1
$region0: #{tpu_custom_call.1}
  #allocation0 [shape = 'u32[]', space=smem, size = 0x4, offset = 0x4, fixed_abs, tag = 'smem constant byte address 0x4 - core index']
  #allocation1 [shape = 'u32[72,128]{1,0:T(1,128)}', space=vmem, size = 0x9000, scoped, tag = 'internal scratch']
  %s0 = inlined_call_operand.hbm [shape: f32[16,32], index: 0, kind: input, shape index: {}]
  %s1 = inlined_call_operand.hbm [shape: f32[16,32], index: 1, kind: input, shape index: {}]
  %s2 = inlined_call_operand.hbm [shape: f32[32,32], index: 2, kind: input, shape index: {}]
  %s3 = inlined_call_operand.hbm [shape: f32[3,32], index: 3, kind: input, shape index: {}]
  %s4 = inlined_call_operand.hbm [shape: f32[16,32], index: 4, kind: output, shape index: {}]
  %s5 = sld [smem:[#allocation0]]
  $region65: #{tpu_custom_call.1} parent=0
    _
  %s7 = ssub.s32 1, %s5
  %s8 = scalar_select 0, %s7, %s5
  $region1: #{tpu_custom_call.1} parent=0
    #allocation2 [shape = 'u8[8192]{0}', space=vmem, size = 0x2000, scoped, tag = 'input window, operand 0']
    #allocation3 [shape = 's32[2]{0}', space=sflag, size = 0x8, scoped, tag = 'scoped memory for tpu_custom_call.1']
    #allocation4 [shape = 's32[2]{0}', space=sflag, size = 0x8, scoped, tag = 'scoped memory for tpu_custom_call.1']
    #allocation5 [shape = 'u8[8192]{0}', space=vmem, size = 0x2000, scoped, tag = 'input window, operand 1']
    #allocation6 [shape = 's32[2]{0}', space=sflag, size = 0x8, scoped, tag = 'scoped memory for tpu_custom_call.1']
    #allocation7 [shape = 'u8[16384]{0}', space=vmem, size = 0x4000, scoped, tag = 'input window, operand 2, single buffered']
    #allocation8 [shape = 'u8[2048]{0}', space=vmem, size = 0x800, scoped, tag = 'input window, operand 3, single buffered']
    #allocation9 [shape = 's32[1]{0}', space=sflag, size = 0x4, scoped, tag = 'scoped memory for tpu_custom_call.1']
    #allocation10 [shape = 'u8[8192]{0}', space=vmem, size = 0x2000, scoped, tag = 'output window, operand 0']
    %9 = vsyncpa [#allocation3], 0
    %s10 = scalar_lea.sflag [#allocation3], 1
    %11 = vsyncpa %s10, 0
    %12 = vsyncpa [#allocation6], 0
    %s13 = scalar_lea.sflag [#allocation6], 1
    %14 = vsyncpa %s13, 0
    %15 = vsyncpa [#allocation9], 0
    %16 = vsyncpa [#allocation4], 0
    %s17 = scalar_lea.sflag [#allocation4], 1
    %18 = vsyncpa %s17, 0
    loop: start=0, step=1, limit=4
    $region2: #{tpu_custom_call.1} parent=1 // loop_pre_header
      _
    $region3: #{tpu_custom_call.1} parent=1 // loop_header
      %s20 = sphi 0, %s24
      %p21 = scmp.ge.s32.totalorder %s20, 4
      %s30 = sphi 0, %s32
      %s33 = sphi 0, %s30
      %s34 = sphi 0, %s33
      %s50 = sphi 0, %s34
      %s56 = sphi 0, %s58
      %s59 = sphi 0, %s56
      %s60 = sphi 0, %s59
      %s76 = sphi 0, %s60
      %s80 = sphi 0, %s80
      %s82 = sphi 0, %s80
      %s83 = sphi 0, %s82
      %s97 = sphi 0, %s83
      %s101 = sphi 0, %s101
      %s103 = sphi 0, %s101
      %s104 = sphi 0, %s103
      %s118 = sphi 0, %s104
      %s124 = sphi 0, %s126
      %s127 = sphi 0, %s124
      %s128 = sphi 0, %s127
      %s144 = sphi 0, %s128
    $region4: #{tpu_custom_call.1} parent=1 // loop_header_branch
      %23 = sbr.rel (%p21) target = $region8
    $region5: #{tpu_custom_call.1} parent=1 // loop_body
      %s25 = ssub.s32 %s20, 1
      %s26 = ssub.s32 %s20, 2
      %s27 = sadd.s32 %s20, 1
      %s28 = ssub.s32 %s20, %s27
      %p29 = scmp.eq.s32.totalorder %s28, 0
      %s31 = sadd.s32 %s30, 1
      %s32 = scalar_select %p29, %s30, %s31
      %p35 = pneg %p29
      %p36 = scmp.eq.s32.totalorder %s20, 1
      %p37 = por %p35, %p36
      %p38 = scmp.ne.s32.totalorder %s30, %s33
      %p39 = scmp.eq.s32.totalorder %s20, 0
      %p40 = por %p38, %p39
      %p41 = scmp.ne.s32.totalorder %s30, %s33
      %p42 = scmp.eq.s32.totalorder %s25, 1
      %p43 = por %p41, %p42
      %p44 = scmp.ne.s32.totalorder %s33, %s34
      %p45 = scmp.eq.s32.totalorder %s25, 0
      %p46 = por %p44, %p45
      %p47 = scmp.ne.s32.totalorder %s33, %s34
      %p48 = scmp.eq.s32.totalorder %s26, 1
      %p49 = por %p47, %p48
      %p51 = scmp.ne.s32.totalorder %s34, %s50
      %p52 = scmp.eq.s32.totalorder %s26, 0
      %p53 = por %p51, %p52
      %s54 = ssub.s32 %s20, %s27
      %p55 = scmp.eq.s32.totalorder %s54, 0
      %s57 = sadd.s32 %s56, 1
      %s58 = scalar_select %p55, %s56, %s57
      %p61 = pneg %p55
      %p62 = scmp.eq.s32.totalorder %s20, 1
      %p63 = por %p61, %p62
      %p64 = scmp.ne.s32.totalorder %s56, %s59
      %p65 = scmp.eq.s32.totalorder %s20, 0
      %p66 = por %p64, %p65
      %p67 = scmp.ne.s32.totalorder %s56, %s59
      %p68 = scmp.eq.s32.totalorder %s25, 1
      %p69 = por %p67, %p68
      %p70 = scmp.ne.s32.totalorder %s59, %s60
      %p71 = scmp.eq.s32.totalorder %s25, 0
      %p72 = por %p70, %p71
      %p73 = scmp.ne.s32.totalorder %s59, %s60
      %p74 = scmp.eq.s32.totalorder %s26, 1
      %p75 = por %p73, %p74
      %p77 = scmp.ne.s32.totalorder %s60, %s76
      %p78 = scmp.eq.s32.totalorder %s26, 0
      %p79 = por %p77, %p78
      %s81 = sadd.s32 %s80, 1
      %p84 = scmp.eq.s32.totalorder %s20, 1
      %p85 = scmp.ne.s32.totalorder %s80, %s82
      %p86 = scmp.eq.s32.totalorder %s20, 0
      %p87 = por %p85, %p86
      %p88 = scmp.ne.s32.totalorder %s80, %s82
      %p89 = scmp.eq.s32.totalorder %s25, 1
      %p90 = por %p88, %p89
      %p91 = scmp.ne.s32.totalorder %s82, %s83
      %p92 = scmp.eq.s32.totalorder %s25, 0
      %p93 = por %p91, %p92
      %p94 = scmp.ne.s32.totalorder %s82, %s83
      %p95 = scmp.eq.s32.totalorder %s26, 1
      %p96 = por %p94, %p95
      %p98 = scmp.ne.s32.totalorder %s83, %s97
      %p99 = scmp.eq.s32.totalorder %s26, 0
      %p100 = por %p98, %p99
      %s102 = sadd.s32 %s101, 1
      %p105 = scmp.eq.s32.totalorder %s20, 1
      %p106 = scmp.ne.s32.totalorder %s101, %s103
      %p107 = scmp.eq.s32.totalorder %s20, 0
      %p108 = por %p106, %p107
      %p109 = scmp.ne.s32.totalorder %s101, %s103
      %p110 = scmp.eq.s32.totalorder %s25, 1
      %p111 = por %p109, %p110
      %p112 = scmp.ne.s32.totalorder %s103, %s104
      %p113 = scmp.eq.s32.totalorder %s25, 0
      %p114 = por %p112, %p113
      %p115 = scmp.ne.s32.totalorder %s103, %s104
      %p116 = scmp.eq.s32.totalorder %s26, 1
      %p117 = por %p115, %p116
      %p119 = scmp.ne.s32.totalorder %s104, %s118
      %p120 = scmp.eq.s32.totalorder %s26, 0
      %p121 = por %p119, %p120
      %s122 = ssub.s32 %s20, %s27
      %p123 = scmp.eq.s32.totalorder %s122, 0
      %s125 = sadd.s32 %s124, 1
      %s126 = scalar_select %p123, %s124, %s125
      %p129 = pneg %p123
      %p130 = scmp.eq.s32.totalorder %s20, 1
      %p131 = por %p129, %p130
      %p132 = scmp.ne.s32.totalorder %s124, %s127
      %p133 = scmp.eq.s32.totalorder %s20, 0
      %p134 = por %p132, %p133
      %p135 = scmp.ne.s32.totalorder %s124, %s127
      %p136 = scmp.eq.s32.totalorder %s25, 1
      %p137 = por %p135, %p136
      %p138 = scmp.ne.s32.totalorder %s127, %s128
      %p139 = scmp.eq.s32.totalorder %s25, 0
      %p140 = por %p138, %p139
      %p141 = scmp.ne.s32.totalorder %s127, %s128
      %p142 = scmp.eq.s32.totalorder %s26, 1
      %p143 = por %p141, %p142
      %p145 = scmp.ne.s32.totalorder %s128, %s144
      %p146 = scmp.eq.s32.totalorder %s26, 0
      %p147 = por %p145, %p146
      %p148 = scmp.le.s32.totalorder 1, %s20
      %p149 = scmp.lt.s32.totalorder %s20, 3
      %p150 = pnand %p148, %p149
      %p151 = pneg %p150
      // Predicated region
      $region9: #{tpu_custom_call.1} parent=5 // pred_check
        _
      $region10: #{tpu_custom_call.1} parent=5 // pred_check_branch
        %153 = sbr.rel (%p150) target = $region12
      $region11: #{tpu_custom_call.1} parent=5 // pred_region
        %s154 = ssub.s32 %s20, 1
        // Predicated region
        $region13: #{tpu_custom_call.1} parent=11 // pred_check
          %p155 = pneg %p93
        $region14: #{tpu_custom_call.1} parent=11 // pred_check_branch
          %157 = sbr.rel (%p155) target = $region16
        $region15: #{tpu_custom_call.1} parent=11 // pred_region
          %159 = vsyncadd [#allocation6], 0
          %s160 = sshll.u32 %s2, 4
          %s161 = int_to_ptr.hbm [resolvable:$true] %s160
          %s162 = sshll.u32 [#allocation7], 4
          %s163 = int_to_ptr.vmem [resolvable:$true] %s162
          %168 = dma.hbm_to_vmem [thread:$0]  %s161, 512, %s163, [#allocation6], 128, 128, 8
        $region16: #{tpu_custom_call.1} parent=11 // pred_fallthru
          _
        // Predicated region
        $region17: #{tpu_custom_call.1} parent=11 // pred_check
          %p169 = pneg %p114
        $region18: #{tpu_custom_call.1} parent=11 // pred_check_branch
          %171 = sbr.rel (%p169) target = $region20
        $region19: #{tpu_custom_call.1} parent=11 // pred_region
          %173 = vsyncadd [#allocation9], 0
          %s175 = sshll.u32 %s3, 4
          %s176 = int_to_ptr.hbm [resolvable:$true] %s175
          %s177 = sshll.u32 [#allocation8], 4
          %s178 = int_to_ptr.vmem [resolvable:$true] %s177
          %180 = dma.hbm_to_vmem [thread:$0]  %s176, 64, %s178, [#allocation9]
        $region20: #{tpu_custom_call.1} parent=11 // pred_fallthru
          _
      $region12: #{tpu_custom_call.1} parent=5 // pred_fallthru
        _
      %p181 = scmp.lt.s32.totalorder %s20, 2
      // Predicated region
      $region21: #{tpu_custom_call.1} parent=5 // pred_check
        %p182 = pneg %p181
      $region22: #{tpu_custom_call.1} parent=5 // pred_check_branch
        %184 = sbr.rel (%p182) target = $region24
      $region23: #{tpu_custom_call.1} parent=5 // pred_region
        // Predicated region
        $region25: #{tpu_custom_call.1} parent=23 // pred_check
          %p185 = pneg %p40
        $region26: #{tpu_custom_call.1} parent=23 // pred_check_branch
          %187 = sbr.rel (%p185) target = $region28
        $region27: #{tpu_custom_call.1} parent=23 // pred_region
          %s188 = sand.u32 %s30, 1
          %s189 = scalar_lea.sflag [#allocation3], %s188
          %s190 = sand.u32 %s30, 1
          %s191 = smul.addr %s190, 8
          %s192 = scalar_lea.vmem [#allocation2], %s191
          %194 = vsyncadd %s189, 0
          %s195 = smul.addr %s20, 8
          %s196 = scalar_lea.hbm %s0, %s195
          %s198 = sshll.u32 %s196, 4
          %s199 = int_to_ptr.hbm [resolvable:$true] %s198
          %s200 = sshll.u32 %s192, 4
          %s201 = int_to_ptr.vmem [resolvable:$true] %s200
          %203 = dma.hbm_to_vmem [thread:$0]  %s199, 128, %s201, %s189
        $region28: #{tpu_custom_call.1} parent=23 // pred_fallthru
          _
        // Predicated region
        $region29: #{tpu_custom_call.1} parent=23 // pred_check
          %p204 = pneg %p66
        $region30: #{tpu_custom_call.1} parent=23 // pred_check_branch
          %206 = sbr.rel (%p204) target = $region32
        $region31: #{tpu_custom_call.1} parent=23 // pred_region
          %s207 = sand.u32 %s20, 1
          %s208 = scalar_lea.sflag [#allocation6], %s207
          %s209 = sand.u32 %s56, 1
          %s210 = smul.addr %s209, 8
          %s211 = scalar_lea.vmem [#allocation5], %s210
          %213 = vsyncadd %s208, 0
          %s214 = smul.addr %s20, 8
          %s215 = scalar_lea.hbm %s1, %s214
          %s217 = sshll.u32 %s215, 4
          %s218 = int_to_ptr.hbm [resolvable:$true] %s217
          %s219 = sshll.u32 %s211, 4
          %s220 = int_to_ptr.vmem [resolvable:$true] %s219
          %222 = dma.hbm_to_vmem [thread:$0]  %s218, 128, %s220, %s208
        $region32: #{tpu_custom_call.1} parent=23 // pred_fallthru
          _
      $region24: #{tpu_custom_call.1} parent=5 // pred_fallthru
        _
      %p223 = scmp.le.s32.totalorder 1, %s20
      %p224 = scmp.lt.s32.totalorder %s20, 3
      %p225 = pnand %p223, %p224
      %p226 = pneg %p225
      // Predicated region
      $region33: #{tpu_custom_call.1} parent=5 // pred_check
        _
      $region34: #{tpu_custom_call.1} parent=5 // pred_check_branch
        %228 = sbr.rel (%p225) target = $region36
      $region35: #{tpu_custom_call.1} parent=5 // pred_region
        %s229 = ssub.s32 %s20, 1
        %s230 = sand.u32 %s33, 1
        %s231 = scalar_lea.sflag [#allocation3], %s230
        %s232 = sand.u32 %s33, 1
        %s233 = smul.addr %s232, 8
        %s234 = scalar_lea.vmem [#allocation2], %s233
        // Predicated region
        $region37: #{tpu_custom_call.1} parent=35 // pred_check
          %p235 = pneg %p46
        $region38: #{tpu_custom_call.1} parent=35 // pred_check_branch
          %237 = sbr.rel (%p235) target = $region40
        $region39: #{tpu_custom_call.1} parent=35 // pred_region
          %239 = dma.done %s231, 128
        $region40: #{tpu_custom_call.1} parent=35 // pred_fallthru
          _
        %s240 = sand.u32 %s25, 1
        %s241 = scalar_lea.sflag [#allocation6], %s240
        %s242 = sand.u32 %s59, 1
        %s243 = smul.addr %s242, 8
        %s244 = scalar_lea.vmem [#allocation5], %s243
        // Predicated region
        $region41: #{tpu_custom_call.1} parent=35 // pred_check
          %p245 = pneg %p72
        $region42: #{tpu_custom_call.1} parent=35 // pred_check_branch
          %247 = sbr.rel (%p245) target = $region44
        $region43: #{tpu_custom_call.1} parent=35 // pred_region
          %249 = dma.done %s241, 128
        $region44: #{tpu_custom_call.1} parent=35 // pred_fallthru
          _
        // Predicated region
        $region45: #{tpu_custom_call.1} parent=35 // pred_check
          %p250 = pneg %p93
        $region46: #{tpu_custom_call.1} parent=35 // pred_check_branch
          %252 = sbr.rel (%p250) target = $region48
        $region47: #{tpu_custom_call.1} parent=35 // pred_region
          %254 = dma.done [#allocation6], 512
        $region48: #{tpu_custom_call.1} parent=35 // pred_fallthru
          _
        // Predicated region
        $region49: #{tpu_custom_call.1} parent=35 // pred_check
          %p255 = pneg %p114
        $region50: #{tpu_custom_call.1} parent=35 // pred_check_branch
          %257 = sbr.rel (%p255) target = $region52
        $region51: #{tpu_custom_call.1} parent=35 // pred_region
          %259 = dma.done [#allocation9], 64
        $region52: #{tpu_custom_call.1} parent=35 // pred_fallthru
          _
        %s260 = sand.u32 %s33, 1
        %s261 = scalar_lea.sflag [#allocation3], %s260
        %s262 = sand.u32 %s33, 1
        %s263 = smul.addr %s262, 8
        %s264 = scalar_lea.vmem [#allocation2], %s263
        %p265 = pneg %p46
        %p266 = pneg %p43
        %s267 = sand.u32 %s25, 1
        %s268 = scalar_lea.sflag [#allocation6], %s267
        %s269 = sand.u32 %s59, 1
        %s270 = smul.addr %s269, 8
        %s271 = scalar_lea.vmem [#allocation5], %s270
        %p272 = pneg %p72
        %p273 = pneg %p69
        %p274 = pneg %p93
        %p275 = pneg %p90
        %p276 = pneg %p114
        %p277 = pneg %p111
        %p278 = pneg %p140
        %p279 = pneg %p137
        %s280 = sand.u32 %s127, 1
        %s281 = scalar_lea.sflag [#allocation4], %s280
        %s282 = sand.u32 %s127, 1
        %s283 = smul.addr %s282, 8
        %s284 = scalar_lea.vmem [#allocation10], %s283
        %v285 = vld [vmem:[%s234] sm:$0xff]
        %v286 = vld [vmem:[#allocation7] sm:$0xff]
        %v287 = vld [vmem:[#allocation7 + $0x8] sm:$0xff]
        %v288 = vld [vmem:[#allocation7 + $0x10] sm:$0xff]
        %v289 = vld [vmem:[#allocation7 + $0x18] sm:$0xff]
        %v290 = vld [vmem:[#allocation8] sm:$0x7]
        %v291 = vperm.slane %v290, 0
        %vm292 = vcmask 261120
        %v294 = vsel %vm292, %v285, 0
        %296 = vmatpush.msra.mxu0 0.0
        %297 = vmatpush.msra.mxu0 0.0
        %298 = vmatpush.msra.mxu0 0.0
        %299 = vmatpush.msra.mxu0 0.0
        %300 = vmatpush.msra.mxu0 0.0
        %301 = vmatpush.msra.mxu0 0.0
        %302 = vmatpush.msra.mxu0 0.0
        %303 = vmatpush.msra.mxu0 0.0
        %304 = vmatpush.msra.mxu0 0.0
        %305 = vmatpush.msra.mxu0 0.0
        %306 = vmatpush.msra.mxu0 0.0
        %307 = vmatpush.msra.mxu0 0.0
        %308 = vmatpush.msra.mxu0 %v289
        %309 = vmatpush.msra.mxu0 %v288
        %310 = vmatpush.msra.mxu0 %v287
        %311 = vmatpush.msra.mxu0 %v286
        %312 = vmatmul.f32.gmra.mxu0 %v294
        %v313 = vpop.f32.mrf.mxu0
        %v314 = vadd.f32 %v291, %v313
        %315 = vdwg.mxu0
        %v316 = vld [vmem:[%s244] sm:$0xff]
        %v317 = vadd.f32 %v314, %v316
        %v318 = vsel %vm292, %v317, 0.0
        %319 = vadd.xlane.f32.xlu0 %v318
        %v320 = vpop.xlane.xlu0 %319
        %v321 = vrcp.pop 32.0
        %v322 = vmul.f32 32.0, %v321
        %v323 = vsub.f32 1.0, %v322
        %v324 = vmul.f32 %v321, %v323
        %v325 = vadd.f32 %v321, %v324
        %vm326 = vweird.f32 %v321
        %v327 = vsel %vm326, %v321, %v325
        %v328 = vmul.f32 %v320, %v327
        %v329 = vsub.f32 %v317, %v328
        %v330 = vmul.f32 %v329, %v329
        %v331 = vsel %vm292, %v330, 0.0
        %332 = vadd.xlane.f32.xlu0 %v331
        %v333 = vpop.xlane.xlu0 %332
        %v334 = vmul.f32 %v333, %v327
        %v335 = vmax.f32 %v334, 0.0
        %v336 = vadd.f32 %v335, 1e-12
        %v337 = vrsqrt.pop %v336
        %v338 = vmul.f32 %v337, %v336
        %v339 = vmul.f32 %v338, %v337
        %v340 = vmul.f32 0.5, %v339
        %v341 = vsub.f32 1.5, %v340
        %v342 = vmul.f32 %v337, %v341
        %vm343 = vweird.f32 %v336
        %vm344 = vweird.f32 %v337
        %vm345 = vmor %vm343, %vm344
        %v346 = vsel %vm345, %v337, %v342
        %v347 = vmul.f32 %v329, %v346
        %v348 = vperm.slane %v290, 1
        %v349 = vmul.f32 %v347, %v348
        %v350 = vperm.slane %v290, 2
        %v351 = vadd.f32 %v349, %v350
        %v352 = vmul.f32 %v351, 0.5
        %v353 = vmul.f32 %v351, 0.70710677
        %v354 = vmul.f32 %v353, %v353
        %v355 = vmin.f32 16.0, %v354
        %v356 = vmul.f32 %v355, 2.1237322e-06
        %v357 = vadd.f32 %v356, 0.00028619796
        %v358 = vmul.f32 %v355, %v357
        %v359 = vadd.f32 %v358, 0.0036580483
        %v360 = vmul.f32 %v355, %v359
        %v361 = vadd.f32 %v360, 0.05243302
        %v362 = vmul.f32 %v355, %v361
        %v363 = vadd.f32 %v362, 0.18741608
        %v364 = vmul.f32 %v355, %v363
        %v365 = vadd.f32 %v364, 1.1283791
        %v366 = vmul.f32 %v353, %v365
        %v367 = vmul.f32 %v355, 3.8918573e-05
        %v368 = vadd.f32 %v367, 0.001143296
        %v369 = vmul.f32 %v355, %v368
        %v370 = vadd.f32 %v369, 0.014752088
        %v371 = vmul.f32 %v355, %v370
        %v372 = vadd.f32 %v371, 0.112945676
        %v373 = vmul.f32 %v355, %v372
        %v374 = vadd.f32 %v373, 0.4994258
        %v375 = vmul.f32 %v355, %v374
        %v376 = vadd.f32 %v375, 1.0
        %v377 = vrcp.pop %v376
        %v378 = vmul.f32 %v376, %v377
        %v379 = vsub.f32 1.0, %v378
        %v380 = vmul.f32 %v377, %v379
        %v381 = vadd.f32 %v377, %v380
        %vm382 = vweird.f32 %v376
        %vm383 = vweird.f32 %v377
        %vm384 = vmor %vm382, %vm383
        %v385 = vsel %vm384, %v377, %v381
        %v386 = vand.u32 2147483647, %v376
        %vm387 = vcmp.eq.f32.partialorder %v386, 8.507059e+37
        %v388 = vand.u32 %v376, 2147483648
        %v389 = vor.u32 1.1754944e-38, %v388
        %v390 = vsel %vm387, %v389, %v385
        %v391 = vmul.f32 %v366, %v390
        %v392 = vmin.f32 %v391, 1.0
        %v393 = vmax.f32 %v392, -1.0
        %v394 = vadd.f32 %v393, 1.0
        %v395 = vmul.f32 %v352, %v394
        %396 = vst.msk [vmem:[%s284] sm:$0xff] %vm292, %v395
        %s397 = sand.u32 %s127, 1
        %s398 = scalar_lea.sflag [#allocation4], %s397
        %s399 = sand.u32 %s127, 1
        %s400 = smul.addr %s399, 8
        %s401 = scalar_lea.vmem [#allocation10], %s400
        // Predicated region
        $region53: #{tpu_custom_call.1} parent=35 // pred_check
          %p402 = pneg %p137
        $region54: #{tpu_custom_call.1} parent=35 // pred_check_branch
          %404 = sbr.rel (%p402) target = $region56
        $region55: #{tpu_custom_call.1} parent=35 // pred_region
          %406 = vsyncadd %s398, 0
          %s407 = smul.addr %s25, 8
          %s408 = scalar_lea.hbm %s4, %s407
          %s410 = sshll.u32 %s401, 4
          %s411 = int_to_ptr.vmem [resolvable:$true] %s410
          %s412 = sshll.u32 %s408, 4
          %s413 = int_to_ptr.hbm [resolvable:$true] %s412
          %415 = dma.vmem_to_hbm [thread:$0]  %s411, 128, %s413, %s398
        $region56: #{tpu_custom_call.1} parent=35 // pred_fallthru
          _
      $region36: #{tpu_custom_call.1} parent=5 // pred_fallthru
        _
      %p416 = scmp.le.s32.totalorder 2, %s20
      // Predicated region
      $region57: #{tpu_custom_call.1} parent=5 // pred_check
        %p417 = pneg %p416
      $region58: #{tpu_custom_call.1} parent=5 // pred_check_branch
        %419 = sbr.rel (%p417) target = $region60
      $region59: #{tpu_custom_call.1} parent=5 // pred_region
        %s420 = ssub.s32 %s20, 2
        // Predicated region
        $region61: #{tpu_custom_call.1} parent=59 // pred_check
          %p421 = pneg %p143
        $region62: #{tpu_custom_call.1} parent=59 // pred_check_branch
          %423 = sbr.rel (%p421) target = $region64
        $region63: #{tpu_custom_call.1} parent=59 // pred_region
          %s424 = sand.u32 %s128, 1
          %s425 = scalar_lea.sflag [#allocation4], %s424
          %s426 = sand.u32 %s128, 1
          %s427 = smul.addr %s426, 8
          %s428 = scalar_lea.vmem [#allocation10], %s427
          %430 = dma.done %s425, 128
        $region64: #{tpu_custom_call.1} parent=59 // pred_fallthru
          _
      $region60: #{tpu_custom_call.1} parent=5 // pred_fallthru
        _
    $region6: #{tpu_custom_call.1} parent=1 // loop_footer
      %s24 = sadd.s32 1, %s20
    $region7: #{tpu_custom_call.1} parent=1 // loop_footer_branch
      %19 = sbr.rel target = $region3
    $region8: #{tpu_custom_call.1} parent=1 // loop_exit
      _
    %431 = vsyncpa [#allocation3], 1
    %s432 = scalar_lea.sflag [#allocation3], 1
    %433 = vsyncpa %s432, 1
    %434 = vsyncpa [#allocation6], 1
    %s435 = scalar_lea.sflag [#allocation6], 1
    %436 = vsyncpa %s435, 1
    %437 = vsyncpa [#allocation9], 1
    %438 = vsyncpa [#allocation4], 1
    %s439 = scalar_lea.sflag [#allocation4], 1
    %440 = vsyncpa %s439, 1

// kernel: tpu_custom_call.1
$region0: #{tpu_custom_call.1}
  #allocation0 [shape = 'u32[]', space=smem, size = 0x4, offset = 0x4, fixed_abs, tag = 'smem constant byte address 0x4 - core index']
  #allocation1 [shape = 'u32[72,128]{1,0:T(1,128)}', space=vmem, size = 0x9000, scoped, tag = 'internal scratch']
  %s0 = inlined_call_operand.hbm [shape: f32[16,32], index: 0, kind: input, shape index: {}]
  %s1 = inlined_call_operand.hbm [shape: f32[16,32], index: 1, kind: input, shape index: {}]
  %s2 = inlined_call_operand.hbm [shape: f32[32,32], index: 2, kind: input, shape index: {}]
  %s3 = inlined_call_operand.hbm [shape: f32[3,32], index: 3, kind: input, shape index: {}]
  %s4 = inlined_call_operand.hbm [shape: f32[16,32], index: 4, kind: output, shape index: {}]
  %s5 = sld [smem:[#allocation0]]
  $region65: #{tpu_custom_call.1} parent=0
    _
  %s7 = ssub.s32 1, %s5
  %s8 = scalar_select 0, %s7, %s5
  $region1: #{tpu_custom_call.1} parent=0
    #allocation2 [shape = 'u8[8192]{0}', space=vmem, size = 0x2000, scoped, tag = 'input window, operand 0']
    #allocation3 [shape = 's32[2]{0}', space=sflag, size = 0x8, scoped, tag = 'scoped memory for tpu_custom_call.1']
    #allocation4 [shape = 's32[2]{0}', space=sflag, size = 0x8, scoped, tag = 'scoped memory for tpu_custom_call.1']
    #allocation5 [shape = 'u8[8192]{0}', space=vmem, size = 0x2000, scoped, tag = 'input window, operand 1']
    #allocation6 [shape = 's32[2]{0}', space=sflag, size = 0x8, scoped, tag = 'scoped memory for tpu_custom_call.1']
    #allocation7 [shape = 'u8[16384]{0}', space=vmem, size = 0x4000, scoped, tag = 'input window, operand 2, single buffered']
    #allocation8 [shape = 'u8[2048]{0}', space=vmem, size = 0x800, scoped, tag = 'input window, operand 3, single buffered']
    #allocation9 [shape = 's32[1]{0}', space=sflag, size = 0x4, scoped, tag = 'scoped memory for tpu_custom_call.1']
    #allocation10 [shape = 'u8[8192]{0}', space=vmem, size = 0x2000, scoped, tag = 'output window, operand 0']
    %9 = vsyncpa [#allocation3], 0
    %s10 = scalar_lea.sflag [#allocation3], 1
    %11 = vsyncpa %s10, 0
    %12 = vsyncpa [#allocation6], 0
    %s13 = scalar_lea.sflag [#allocation6], 1
    %14 = vsyncpa %s13, 0
    %15 = vsyncpa [#allocation9], 0
    %16 = vsyncpa [#allocation4], 0
    %s17 = scalar_lea.sflag [#allocation4], 1
    %18 = vsyncpa %s17, 0
    loop: start=0, step=1, limit=4
    $region2: #{tpu_custom_call.1} parent=1 // loop_pre_header
      _
    $region3: #{tpu_custom_call.1} parent=1 // loop_header
      %s20 = sphi 0, %s24
      %p21 = scmp.ge.s32.totalorder %s20, 4
      %s30 = sphi 0, %s32
      %s33 = sphi 0, %s30
      %s34 = sphi 0, %s33
      %s50 = sphi 0, %s34
      %s56 = sphi 0, %s58
      %s59 = sphi 0, %s56
      %s60 = sphi 0, %s59
      %s76 = sphi 0, %s60
      %s80 = sphi 0, %s80
      %s82 = sphi 0, %s80
      %s83 = sphi 0, %s82
      %s97 = sphi 0, %s83
      %s101 = sphi 0, %s101
      %s103 = sphi 0, %s101
      %s104 = sphi 0, %s103
      %s118 = sphi 0, %s104
      %s124 = sphi 0, %s126
      %s127 = sphi 0, %s124
      %s128 = sphi 0, %s127
      %s144 = sphi 0, %s128
    $region4: #{tpu_custom_call.1} parent=1 // loop_header_branch
      %23 = sbr.rel (%p21) target = $region8
    $region5: #{tpu_custom_call.1} parent=1 // loop_body
      %s25 = ssub.s32 %s20, 1
      %s26 = ssub.s32 %s20, 2
      %s27 = sadd.s32 %s20, 1
      %s28 = ssub.s32 %s20, %s27
      %p29 = scmp.eq.s32.totalorder %s28, 0
      %s31 = sadd.s32 %s30, 1
      %s32 = scalar_select %p29, %s30, %s31
      %p35 = pneg %p29
      %p36 = scmp.eq.s32.totalorder %s20, 1
      %p37 = por %p35, %p36
      %p38 = scmp.ne.s32.totalorder %s30, %s33
      %p39 = scmp.eq.s32.totalorder %s20, 0
      %p40 = por %p38, %p39
      %p41 = scmp.ne.s32.totalorder %s30, %s33
      %p42 = scmp.eq.s32.totalorder %s25, 1
      %p43 = por %p41, %p42
      %p44 = scmp.ne.s32.totalorder %s33, %s34
      %p45 = scmp.eq.s32.totalorder %s25, 0
      %p46 = por %p44, %p45
      %p47 = scmp.ne.s32.totalorder %s33, %s34
      %p48 = scmp.eq.s32.totalorder %s26, 1
      %p49 = por %p47, %p48
      %p51 = scmp.ne.s32.totalorder %s34, %s50
      %p52 = scmp.eq.s32.totalorder %s26, 0
      %p53 = por %p51, %p52
      %s54 = ssub.s32 %s20, %s27
      %p55 = scmp.eq.s32.totalorder %s54, 0
      %s57 = sadd.s32 %s56, 1
      %s58 = scalar_select %p55, %s56, %s57
      %p61 = pneg %p55
      %p62 = scmp.eq.s32.totalorder %s20, 1
      %p63 = por %p61, %p62
      %p64 = scmp.ne.s32.totalorder %s56, %s59
      %p65 = scmp.eq.s32.totalorder %s20, 0
      %p66 = por %p64, %p65
      %p67 = scmp.ne.s32.totalorder %s56, %s59
      %p68 = scmp.eq.s32.totalorder %s25, 1
      %p69 = por %p67, %p68
      %p70 = scmp.ne.s32.totalorder %s59, %s60
      %p71 = scmp.eq.s32.totalorder %s25, 0
      %p72 = por %p70, %p71
      %p73 = scmp.ne.s32.totalorder %s59, %s60
      %p74 = scmp.eq.s32.totalorder %s26, 1
      %p75 = por %p73, %p74
      %p77 = scmp.ne.s32.totalorder %s60, %s76
      %p78 = scmp.eq.s32.totalorder %s26, 0
      %p79 = por %p77, %p78
      %s81 = sadd.s32 %s80, 1
      %p84 = scmp.eq.s32.totalorder %s20, 1
      %p85 = scmp.ne.s32.totalorder %s80, %s82
      %p86 = scmp.eq.s32.totalorder %s20, 0
      %p87 = por %p85, %p86
      %p88 = scmp.ne.s32.totalorder %s80, %s82
      %p89 = scmp.eq.s32.totalorder %s25, 1
      %p90 = por %p88, %p89
      %p91 = scmp.ne.s32.totalorder %s82, %s83
      %p92 = scmp.eq.s32.totalorder %s25, 0
      %p93 = por %p91, %p92
      %p94 = scmp.ne.s32.totalorder %s82, %s83
      %p95 = scmp.eq.s32.totalorder %s26, 1
      %p96 = por %p94, %p95
      %p98 = scmp.ne.s32.totalorder %s83, %s97
      %p99 = scmp.eq.s32.totalorder %s26, 0
      %p100 = por %p98, %p99
      %s102 = sadd.s32 %s101, 1
      %p105 = scmp.eq.s32.totalorder %s20, 1
      %p106 = scmp.ne.s32.totalorder %s101, %s103
      %p107 = scmp.eq.s32.totalorder %s20, 0
      %p108 = por %p106, %p107
      %p109 = scmp.ne.s32.totalorder %s101, %s103
      %p110 = scmp.eq.s32.totalorder %s25, 1
      %p111 = por %p109, %p110
      %p112 = scmp.ne.s32.totalorder %s103, %s104
      %p113 = scmp.eq.s32.totalorder %s25, 0
      %p114 = por %p112, %p113
      %p115 = scmp.ne.s32.totalorder %s103, %s104
      %p116 = scmp.eq.s32.totalorder %s26, 1
      %p117 = por %p115, %p116
      %p119 = scmp.ne.s32.totalorder %s104, %s118
      %p120 = scmp.eq.s32.totalorder %s26, 0
      %p121 = por %p119, %p120
      %s122 = ssub.s32 %s20, %s27
      %p123 = scmp.eq.s32.totalorder %s122, 0
      %s125 = sadd.s32 %s124, 1
      %s126 = scalar_select %p123, %s124, %s125
      %p129 = pneg %p123
      %p130 = scmp.eq.s32.totalorder %s20, 1
      %p131 = por %p129, %p130
      %p132 = scmp.ne.s32.totalorder %s124, %s127
      %p133 = scmp.eq.s32.totalorder %s20, 0
      %p134 = por %p132, %p133
      %p135 = scmp.ne.s32.totalorder %s124, %s127
      %p136 = scmp.eq.s32.totalorder %s25, 1
      %p137 = por %p135, %p136
      %p138 = scmp.ne.s32.totalorder %s127, %s128
      %p139 = scmp.eq.s32.totalorder %s25, 0
      %p140 = por %p138, %p139
      %p141 = scmp.ne.s32.totalorder %s127, %s128
      %p142 = scmp.eq.s32.totalorder %s26, 1
      %p143 = por %p141, %p142
      %p145 = scmp.ne.s32.totalorder %s128, %s144
      %p146 = scmp.eq.s32.totalorder %s26, 0
      %p147 = por %p145, %p146
      %p148 = scmp.le.s32.totalorder 1, %s20
      %p149 = scmp.lt.s32.totalorder %s20, 3
      %p150 = pnand %p148, %p149
      %p151 = pneg %p150
      // Predicated region
      $region9: #{tpu_custom_call.1} parent=5 // pred_check
        _
      $region10: #{tpu_custom_call.1} parent=5 // pred_check_branch
        %153 = sbr.rel (%p150) target = $region12
      $region11: #{tpu_custom_call.1} parent=5 // pred_region
        %s154 = ssub.s32 %s20, 1
        // Predicated region
        $region13: #{tpu_custom_call.1} parent=11 // pred_check
          %p155 = pneg %p93
        $region14: #{tpu_custom_call.1} parent=11 // pred_check_branch
          %157 = sbr.rel (%p155) target = $region16
        $region15: #{tpu_custom_call.1} parent=11 // pred_region
          %159 = vsyncadd [#allocation6], 0
          %s160 = sshll.u32 %s2, 4
          %s161 = int_to_ptr.hbm [resolvable:$true] %s160
          %s162 = sshll.u32 [#allocation7], 4
          %s163 = int_to_ptr.vmem [resolvable:$true] %s162
          %168 = dma.hbm_to_vmem [thread:$0]  %s161, 512, %s163, [#allocation6], 128, 128, 8
        $region16: #{tpu_custom_call.1} parent=11 // pred_fallthru
          _
        // Predicated region
        $region17: #{tpu_custom_call.1} parent=11 // pred_check
          %p169 = pneg %p114
        $region18: #{tpu_custom_call.1} parent=11 // pred_check_branch
          %171 = sbr.rel (%p169) target = $region20
        $region19: #{tpu_custom_call.1} parent=11 // pred_region
          %173 = vsyncadd [#allocation9], 0
          %s175 = sshll.u32 %s3, 4
          %s176 = int_to_ptr.hbm [resolvable:$true] %s175
          %s177 = sshll.u32 [#allocation8], 4
          %s178 = int_to_ptr.vmem [resolvable:$true] %s177
          %180 = dma.hbm_to_vmem [thread:$0]  %s176, 64, %s178, [#allocation9]
        $region20: #{tpu_custom_call.1} parent=11 // pred_fallthru
          _
      $region12: #{tpu_custom_call.1} parent=5 // pred_fallthru
        _
      %p181 = scmp.lt.s32.totalorder %s20, 2
      // Predicated region
      $region21: #{tpu_custom_call.1} parent=5 // pred_check
        %p182 = pneg %p181
      $region22: #{tpu_custom_call.1} parent=5 // pred_check_branch
        %184 = sbr.rel (%p182) target = $region24
      $region23: #{tpu_custom_call.1} parent=5 // pred_region
        // Predicated region
        $region25: #{tpu_custom_call.1} parent=23 // pred_check
          %p185 = pneg %p40
        $region26: #{tpu_custom_call.1} parent=23 // pred_check_branch
          %187 = sbr.rel (%p185) target = $region28
        $region27: #{tpu_custom_call.1} parent=23 // pred_region
          %s188 = sand.u32 %s30, 1
          %s189 = scalar_lea.sflag [#allocation3], %s188
          %s190 = sand.u32 %s30, 1
          %s191 = smul.addr %s190, 8
          %s192 = scalar_lea.vmem [#allocation2], %s191
          %194 = vsyncadd %s189, 0
          %s195 = smul.addr %s20, 8
          %s196 = scalar_lea.hbm %s0, %s195
          %s198 = sshll.u32 %s196, 4
          %s199 = int_to_ptr.hbm [resolvable:$true] %s198
          %s200 = sshll.u32 %s192, 4
          %s201 = int_to_ptr.vmem [resolvable:$true] %s200
          %203 = dma.hbm_to_vmem [thread:$0]  %s199, 128, %s201, %s189
        $region28: #{tpu_custom_call.1} parent=23 // pred_fallthru
          _
        // Predicated region
        $region29: #{tpu_custom_call.1} parent=23 // pred_check
          %p204 = pneg %p66
        $region30: #{tpu_custom_call.1} parent=23 // pred_check_branch
          %206 = sbr.rel (%p204) target = $region32
        $region31: #{tpu_custom_call.1} parent=23 // pred_region
          %s207 = sand.u32 %s20, 1
          %s208 = scalar_lea.sflag [#allocation6], %s207
          %s209 = sand.u32 %s56, 1
          %s210 = smul.addr %s209, 8
          %s211 = scalar_lea.vmem [#allocation5], %s210
          %213 = vsyncadd %s208, 0
          %s214 = smul.addr %s20, 8
          %s215 = scalar_lea.hbm %s1, %s214
          %s217 = sshll.u32 %s215, 4
          %s218 = int_to_ptr.hbm [resolvable:$true] %s217
          %s219 = sshll.u32 %s211, 4
          %s220 = int_to_ptr.vmem [resolvable:$true] %s219
          %222 = dma.hbm_to_vmem [thread:$0]  %s218, 128, %s220, %s208
        $region32: #{tpu_custom_call.1} parent=23 // pred_fallthru
          _
      $region24: #{tpu_custom_call.1} parent=5 // pred_fallthru
        _
      %p223 = scmp.le.s32.totalorder 1, %s20
      %p224 = scmp.lt.s32.totalorder %s20, 3
      %p225 = pnand %p223, %p224
      %p226 = pneg %p225
      // Predicated region
      $region33: #{tpu_custom_call.1} parent=5 // pred_check
        _
      $region34: #{tpu_custom_call.1} parent=5 // pred_check_branch
        %228 = sbr.rel (%p225) target = $region36
      $region35: #{tpu_custom_call.1} parent=5 // pred_region
        %s229 = ssub.s32 %s20, 1
        %s230 = sand.u32 %s33, 1
        %s231 = scalar_lea.sflag [#allocation3], %s230
        %s232 = sand.u32 %s33, 1
        %s233 = smul.addr %s232, 8
        %s234 = scalar_lea.vmem [#allocation2], %s233
        // Predicated region
        $region37: #{tpu_custom_call.1} parent=35 // pred_check
          %p235 = pneg %p46
        $region38: #{tpu_custom_call.1} parent=35 // pred_check_branch
          %237 = sbr.rel (%p235) target = $region40
        $region39: #{tpu_custom_call.1} parent=35 // pred_region
          %239 = dma.done %s231, 128
        $region40: #{tpu_custom_call.1} parent=35 // pred_fallthru
          _
        %s240 = sand.u32 %s25, 1
        %s241 = scalar_lea.sflag [#allocation6], %s240
        %s242 = sand.u32 %s59, 1
        %s243 = smul.addr %s242, 8
        %s244 = scalar_lea.vmem [#allocation5], %s243
        // Predicated region
        $region41: #{tpu_custom_call.1} parent=35 // pred_check
          %p245 = pneg %p72
        $region42: #{tpu_custom_call.1} parent=35 // pred_check_branch
          %247 = sbr.rel (%p245) target = $region44
        $region43: #{tpu_custom_call.1} parent=35 // pred_region
          %249 = dma.done %s241, 128
        $region44: #{tpu_custom_call.1} parent=35 // pred_fallthru
          _
        // Predicated region
        $region45: #{tpu_custom_call.1} parent=35 // pred_check
          %p250 = pneg %p93
        $region46: #{tpu_custom_call.1} parent=35 // pred_check_branch
          %252 = sbr.rel (%p250) target = $region48
        $region47: #{tpu_custom_call.1} parent=35 // pred_region
          %254 = dma.done [#allocation6], 512
        $region48: #{tpu_custom_call.1} parent=35 // pred_fallthru
          _
        // Predicated region
        $region49: #{tpu_custom_call.1} parent=35 // pred_check
          %p255 = pneg %p114
        $region50: #{tpu_custom_call.1} parent=35 // pred_check_branch
          %257 = sbr.rel (%p255) target = $region52
        $region51: #{tpu_custom_call.1} parent=35 // pred_region
          %259 = dma.done [#allocation9], 64
        $region52: #{tpu_custom_call.1} parent=35 // pred_fallthru
          _
        %s260 = sand.u32 %s33, 1
        %s261 = scalar_lea.sflag [#allocation3], %s260
        %s262 = sand.u32 %s33, 1
        %s263 = smul.addr %s262, 8
        %s264 = scalar_lea.vmem [#allocation2], %s263
        %p265 = pneg %p46
        %p266 = pneg %p43
        %s267 = sand.u32 %s25, 1
        %s268 = scalar_lea.sflag [#allocation6], %s267
        %s269 = sand.u32 %s59, 1
        %s270 = smul.addr %s269, 8
        %s271 = scalar_lea.vmem [#allocation5], %s270
        %p272 = pneg %p72
        %p273 = pneg %p69
        %p274 = pneg %p93
        %p275 = pneg %p90
        %p276 = pneg %p114
        %p277 = pneg %p111
        %p278 = pneg %p140
        %p279 = pneg %p137
        %s280 = sand.u32 %s127, 1
        %s281 = scalar_lea.sflag [#allocation4], %s280
        %s282 = sand.u32 %s127, 1
        %s283 = smul.addr %s282, 8
        %s284 = scalar_lea.vmem [#allocation10], %s283
        %v285 = vld [vmem:[%s234] sm:$0xff]
        %v286 = vld [vmem:[#allocation7] sm:$0xff]
        %v287 = vld [vmem:[#allocation7 + $0x8] sm:$0xff]
        %v288 = vld [vmem:[#allocation7 + $0x10] sm:$0xff]
        %v289 = vld [vmem:[#allocation7 + $0x18] sm:$0xff]
        %v290 = vld [vmem:[#allocation8] sm:$0x7]
        %v291 = vperm.slane %v290, 0
        %vm292 = vcmask 261120
        %v294 = vsel %vm292, %v285, 0
        %296 = vmatpush.msra.mxu0 0.0
        %297 = vmatpush.msra.mxu0 0.0
        %298 = vmatpush.msra.mxu0 0.0
        %299 = vmatpush.msra.mxu0 0.0
        %300 = vmatpush.msra.mxu0 0.0
        %301 = vmatpush.msra.mxu0 0.0
        %302 = vmatpush.msra.mxu0 0.0
        %303 = vmatpush.msra.mxu0 0.0
        %304 = vmatpush.msra.mxu0 0.0
        %305 = vmatpush.msra.mxu0 0.0
        %306 = vmatpush.msra.mxu0 0.0
        %307 = vmatpush.msra.mxu0 0.0
        %308 = vmatpush.msra.mxu0 %v289
        %309 = vmatpush.msra.mxu0 %v288
        %310 = vmatpush.msra.mxu0 %v287
        %311 = vmatpush.msra.mxu0 %v286
        %312 = vmatmul.f32.gmra.mxu0 %v294
        %v313 = vpop.f32.mrf.mxu0
        %v314 = vadd.f32 %v291, %v313
        %315 = vdwg.mxu0
        %v316 = vld [vmem:[%s244] sm:$0xff]
        %v317 = vadd.f32 %v314, %v316
        %v318 = vsel %vm292, %v317, 0.0
        %319 = vadd.xlane.f32.xlu0 %v318
        %v320 = vpop.xlane.xlu0 %319
        %v321 = vrcp.pop 32.0
        %v322 = vmul.f32 32.0, %v321
        %v323 = vsub.f32 1.0, %v322
        %v324 = vmul.f32 %v321, %v323
        %v325 = vadd.f32 %v321, %v324
        %vm326 = vweird.f32 %v321
        %v327 = vsel %vm326, %v321, %v325
        %v328 = vmul.f32 %v320, %v327
        %v329 = vsub.f32 %v317, %v328
        %v330 = vmul.f32 %v329, %v329
        %v331 = vsel %vm292, %v330, 0.0
        %332 = vadd.xlane.f32.xlu0 %v331
        %v333 = vpop.xlane.xlu0 %332
        %v334 = vmul.f32 %v333, %v327
        %v335 = vmax.f32 %v334, 0.0
        %v336 = vadd.f32 %v335, 1e-12
        %v337 = vrsqrt.pop %v336
        %v338 = vmul.f32 %v337, %v336
        %v339 = vmul.f32 %v338, %v337
        %v340 = vmul.f32 0.5, %v339
        %v341 = vsub.f32 1.5, %v340
        %v342 = vmul.f32 %v337, %v341
        %vm343 = vweird.f32 %v336
        %vm344 = vweird.f32 %v337
        %vm345 = vmor %vm343, %vm344
        %v346 = vsel %vm345, %v337, %v342
        %v347 = vmul.f32 %v329, %v346
        %v348 = vperm.slane %v290, 1
        %v349 = vmul.f32 %v347, %v348
        %v350 = vperm.slane %v290, 2
        %v351 = vadd.f32 %v349, %v350
        %v352 = vmul.f32 %v351, 0.5
        %v353 = vmul.f32 %v351, 0.70710677
        %v354 = vmul.f32 %v353, %v353
        %v355 = vmin.f32 16.0, %v354
        %v356 = vmul.f32 %v355, 2.1237322e-06
        %v357 = vadd.f32 %v356, 0.00028619796
        %v358 = vmul.f32 %v355, %v357
        %v359 = vadd.f32 %v358, 0.0036580483
        %v360 = vmul.f32 %v355, %v359
        %v361 = vadd.f32 %v360, 0.05243302
        %v362 = vmul.f32 %v355, %v361
        %v363 = vadd.f32 %v362, 0.18741608
        %v364 = vmul.f32 %v355, %v363
        %v365 = vadd.f32 %v364, 1.1283791
        %v366 = vmul.f32 %v353, %v365
        %v367 = vmul.f32 %v355, 3.8918573e-05
        %v368 = vadd.f32 %v367, 0.001143296
        %v369 = vmul.f32 %v355, %v368
        %v370 = vadd.f32 %v369, 0.014752088
        %v371 = vmul.f32 %v355, %v370
        %v372 = vadd.f32 %v371, 0.112945676
        %v373 = vmul.f32 %v355, %v372
        %v374 = vadd.f32 %v373, 0.4994258
        %v375 = vmul.f32 %v355, %v374
        %v376 = vadd.f32 %v375, 1.0
        %v377 = vrcp.pop %v376
        %v378 = vmul.f32 %v376, %v377
        %v379 = vsub.f32 1.0, %v378
        %v380 = vmul.f32 %v377, %v379
        %v381 = vadd.f32 %v377, %v380
        %vm382 = vweird.f32 %v376
        %vm383 = vweird.f32 %v377
        %vm384 = vmor %vm382, %vm383
        %v385 = vsel %vm384, %v377, %v381
        %v386 = vand.u32 2147483647, %v376
        %vm387 = vcmp.eq.f32.partialorder %v386, 8.507059e+37
        %v388 = vand.u32 %v376, 2147483648
        %v389 = vor.u32 1.1754944e-38, %v388
        %v390 = vsel %vm387, %v389, %v385
        %v391 = vmul.f32 %v366, %v390
        %v392 = vmin.f32 %v391, 1.0
        %v393 = vmax.f32 %v392, -1.0
        %v394 = vadd.f32 %v393, 1.0
        %v395 = vmul.f32 %v352, %v394
        %396 = vst.msk [vmem:[%s284] sm:$0xff] %vm292, %v395
        %s397 = sand.u32 %s127, 1
        %s398 = scalar_lea.sflag [#allocation4], %s397
        %s399 = sand.u32 %s127, 1
        %s400 = smul.addr %s399, 8
        %s401 = scalar_lea.vmem [#allocation10], %s400
        // Predicated region
        $region53: #{tpu_custom_call.1} parent=35 // pred_check
          %p402 = pneg %p137
        $region54: #{tpu_custom_call.1} parent=35 // pred_check_branch
          %404 = sbr.rel (%p402) target = $region56
        $region55: #{tpu_custom_call.1} parent=35 // pred_region
          %406 = vsyncadd %s398, 0
          %s407 = smul.addr %s25, 8
          %s408 = scalar_lea.hbm %s4, %s407
          %s410 = sshll.u32 %s401, 4
          %s411 = int_to_ptr.vmem [resolvable:$true] %s410
          %s412 = sshll.u32 %s408, 4
          %s413 = int_to_ptr.hbm [resolvable:$true] %s412
          %415 = dma.vmem_to_hbm [thread:$0]  %s411, 128, %s413, %s398
        $region56: #{tpu_custom_call.1} parent=35 // pred_fallthru
          _
      $region36: #{tpu_custom_call.1} parent=5 // pred_fallthru
        _
      %p416 = scmp.le.s32.totalorder 2, %s20
      // Predicated region
      $region57: #{tpu_custom_call.1} parent=5 // pred_check
        %p417 = pneg %p416
      $region58: #{tpu_custom_call.1} parent=5 // pred_check_branch
        %419 = sbr.rel (%p417) target = $region60
      $region59: #{tpu_custom_call.1} parent=5 // pred_region
        %s420 = ssub.s32 %s20, 2
        // Predicated region
        $region61: #{tpu_custom_call.1} parent=59 // pred_check
          %p421 = pneg %p143
        $region62: #{tpu_custom_call.1} parent=59 // pred_check_branch
          %423 = sbr.rel (%p421) target = $region64
        $region63: #{tpu_custom_call.1} parent=59 // pred_region
          %s424 = sand.u32 %s128, 1
          %s425 = scalar_lea.sflag [#allocation4], %s424
          %s426 = sand.u32 %s128, 1
          %s427 = smul.addr %s426, 8
          %s428 = scalar_lea.vmem [#allocation10], %s427
          %430 = dma.done %s425, 128
        $region64: #{tpu_custom_call.1} parent=59 // pred_fallthru
          _
      $region60: #{tpu_custom_call.1} parent=5 // pred_fallthru
        _
    $region6: #{tpu_custom_call.1} parent=1 // loop_footer
      %s24 = sadd.s32 1, %s20
    $region7: #{tpu_custom_call.1} parent=1 // loop_footer_branch
      %19 = sbr.rel target = $region3
    $region8: #{tpu_custom_call.1} parent=1 // loop_exit
      _
    %431 = vsyncpa [#allocation3], 1
    %s432 = scalar_lea.sflag [#allocation3], 1
    %433 = vsyncpa %s432, 1
    %434 = vsyncpa [#allocation6], 1
    %s435 = scalar_lea.sflag [#allocation6], 1
    %436 = vsyncpa %s435, 1
    %437 = vsyncpa [#allocation9], 1
    %438 = vsyncpa [#allocation4], 1
    %s439 = scalar_lea.sflag [#allocation4], 1
    %440 = vsyncpa %s439, 1

</llo_original>
